<compile_context>
chip_gen: v7x
topology: tpu7x:2x2x1
jax: 0.10.0
libtpu: 0.0.40
codegen_flags: <defaults>
</compile_context>

<pallas_src>
import functools

import jax
import jax.numpy as jnp
from jax.experimental import pallas as pl
from jax.experimental.pallas import tpu as pltpu


def _single_stream_kernel(x_ref, w_ref, b_ref, o_ref, rp_ref, *,
                          Nb, H, W, Cpad, Ho, Wo):
    """One batch block (Nb images) per grid step.

    x_ref : (Nb*H*W, 9*Cin)   im2col patches (zero spatial padding baked in)
    w_ref : (9*Cin, Cpad)     conv weights, taps flattened, Cout 0-padded
    b_ref : (1, Cpad)         conv bias (0-padded)
    o_ref : (Nb, Ho*Wo, Cpad) pooled output (flat lane-dense slab)
    rp_ref: (Nb*Ho*3*Wo, Cpad) VMEM scratch holding the -inf column-padded
                               row-maxima; read back with stride-3 ds loads.
    """
    Hp, Wp = 3 * Ho, 3 * Wo
    nrows = min(H, Hp - 1)          # conv rows actually touched by the pool
    ncols = min(W, Wp - 1)
    rpad = Hp - 1 - nrows           # 0 or 1 trailing -inf rows
    cpad = Wp - 1 - ncols           # 0 or 1 trailing -inf cols

    # ---- conv 3x3, pad=1: a single (Nb*H*W, 9*Cin) x (9*Cin, Cpad) MXU matmul ----
    conv = jnp.dot(x_ref[...], w_ref[...], preferred_element_type=jnp.float32)
    conv = (conv + b_ref[...]).reshape(Nb, H, W, Cpad)   # leading-dim split: free

    neg_row = jnp.full((1, W, Cpad), -jnp.inf, dtype=jnp.float32)
    neg_col = jnp.full((Ho, 1, Cpad), -jnp.inf, dtype=jnp.float32)

    # ---- maxpool k=3, s=3, pad=1 ----
    for n in range(Nb):                                   # static, small
        img = conv[n]                                     # (H, W, Cpad)

        # Row windows: -inf pad rows to 3*Ho, group-of-3 via leading-dim
        # reshape, two full-slab maxima (pure VPU, no sublane shuffles).
        rparts = [neg_row, img[:nrows]] + ([neg_row] if rpad else [])
        g = jnp.concatenate(rparts, axis=0).reshape(Ho, 3, W, Cpad)
        r = jnp.maximum(jnp.maximum(g[:, 0], g[:, 1]), g[:, 2])   # (Ho, W, Cpad)

        # Column windows: -inf pad cols to 3*Wo so each window is an exact
        # group of 3 in the flattened (Ho*3*Wo) order; park in scratch.
        cparts = [neg_col, r[:, :ncols]] + ([neg_col] if cpad else [])
        rp = jnp.concatenate(cparts, axis=1).reshape(Ho * Wp, Cpad)
        rp_ref[pl.ds(n * Ho * Wp, Ho * Wp), :] = rp       # aligned full-width store

    # flat index = 3*((n*Ho + ho)*Wo + wo) + j, so three stride-3 sublane loads
    # line up with (n, ho, wo) row-major across ALL Nb images at once.
    M = Nb * Ho * Wo
    p0 = rp_ref[pl.ds(0, M, stride=3), :]
    p1 = rp_ref[pl.ds(1, M, stride=3), :]
    p2 = rp_ref[pl.ds(2, M, stride=3), :]
    o_ref[...] = jnp.maximum(jnp.maximum(p0, p1), p2).reshape(Nb, Ho * Wo, Cpad)


def _pick_batch_block(N):
    """Largest divisor of N (small cap) that leaves >= 2 grid steps.

    Keeps both v7x TensorCores busy via the 'parallel' grid axis while
    amortizing the ~0.35us/step overhead for larger batches.
    """
    best = 1
    for nb in range(2, min(N, 16) + 1):
        if N % nb == 0 and N // nb >= 2:
            best = nb
    return best


def single_stream_forward(x_nchw, w_hwio, b):
    """Conv2d(Cin->Cout, k=3, pad=1) + MaxPool2d(k=3, s=3, pad=1); NCHW in/out."""
    N, Cin, H, W = x_nchw.shape
    Cout = w_hwio.shape[-1]
    Ho = (H - 1) // 3 + 1
    Wo = (W - 1) // 3 + 1
    Cpad = ((Cout + 127) // 128) * 128        # lane-dense channel axis
    K = 9 * Cin
    Nb = _pick_batch_block(N)
    assert (Nb * H * W) % 8 == 0, "im2col block must be sublane aligned"

    # layout glue: NCHW -> NHWC, zero spatial pad, im2col, channel pad.
    x = jnp.transpose(x_nchw, (0, 2, 3, 1)).astype(jnp.float32)
    xp = jnp.pad(x, ((0, 0), (1, 1), (1, 1), (0, 0)))
    patches = jnp.concatenate(
        [xp[:, dh:dh + H, dw:dw + W, :] for dh in range(3) for dw in range(3)],
        axis=-1).reshape(N * H * W, K)                       # (N*H*W, 9*Cin)
    w2 = jnp.pad(w_hwio.astype(jnp.float32).reshape(K, Cout),
                 ((0, 0), (0, Cpad - Cout)))                 # (9*Cin, Cpad)
    b2 = jnp.pad(b.astype(jnp.float32).reshape(1, Cout),
                 ((0, 0), (0, Cpad - Cout)))                 # (1, Cpad)

    kernel = functools.partial(_single_stream_kernel, Nb=Nb, H=H, W=W,
                               Cpad=Cpad, Ho=Ho, Wo=Wo)

    out = pl.pallas_call(
        kernel,
        out_shape=jax.ShapeDtypeStruct((N, Ho * Wo, Cpad), jnp.float32),
        grid_spec=pltpu.PrefetchScalarGridSpec(
            num_scalar_prefetch=0,
            grid=(N // Nb,),
            in_specs=[
                pl.BlockSpec((Nb * H * W, K), lambda n: (n, 0)),
                pl.BlockSpec((K, Cpad), lambda n: (0, 0)),
                pl.BlockSpec((1, Cpad), lambda n: (0, 0)),
            ],
            out_specs=pl.BlockSpec((Nb, Ho * Wo, Cpad), lambda n: (n, 0, 0)),
            scratch_shapes=[pltpu.VMEM((Nb * Ho * 3 * Wo, Cpad), jnp.float32)],
        ),
        compiler_params=pltpu.CompilerParams(
            dimension_semantics=("parallel",)),
    )(patches, w2, b2)

    # layout glue: drop channel padding, NHWC(flat) -> NCHW (PyTorch convention).
    out = out[:, :, :Cout].reshape(N, Ho, Wo, Cout)
    return jnp.transpose(out, (0, 3, 1, 2))


def reference_forward(x_nchw, w_hwio, b):
    conv = jax.lax.conv_general_dilated(
        x_nchw.astype(jnp.float32), w_hwio.astype(jnp.float32),
        window_strides=(1, 1), padding=((1, 1), (1, 1)),
        dimension_numbers=("NCHW", "HWIO", "NCHW"))
    conv = conv + b[None, :, None, None]
    pooled = jax.lax.reduce_window(
        conv, -jnp.inf, jax.lax.max,
        window_dimensions=(1, 1, 3, 3), window_strides=(1, 1, 3, 3),
        padding=((0, 0), (0, 0), (1, 1), (1, 1)))
    return pooled


if __name__ == "__main__":
    key = jax.random.PRNGKey(0)
    kx, kw, kb = jax.random.split(key, 3)

    N, Cin, H, W = 2, 3, 16, 16
    out_c = 8

    x = jax.random.normal(kx, (N, Cin, H, W), dtype=jnp.float32)
    # deterministic synthetic parameters; weights stored HWIO = (3, 3, Cin, Cout)
    w = 0.1 * jax.random.normal(kw, (3, 3, Cin, out_c), dtype=jnp.float32)
    b = 0.1 * jax.random.normal(kb, (out_c,), dtype=jnp.float32)

    out = single_stream_forward(x, w, b)
    out = jax.block_until_ready(out)

    ref = reference_forward(x, w, b)
    assert out.shape == (N, out_c, 6, 6), out.shape
    err = float(jnp.max(jnp.abs(out - ref)))
    assert err < 1e-3, f"max abs err {err}"
    print("KERNEL_OK")
</pallas_src>

<mosaic_0001>
module attributes {stable_mosaic.version = 11 : i64} {
  func.func @_single_stream_kernel(%arg0: i32, %arg1: memref<256x27xf32, #tpu.memory_space<vmem>>, %arg2: memref<27x128xf32, #tpu.memory_space<vmem>>, %arg3: memref<1x128xf32, #tpu.memory_space<vmem>>, %arg4: memref<1x36x128xf32, #tpu.memory_space<vmem>>, %arg5: memref<108x128xf32, #tpu.memory_space<vmem>>) attributes {dimension_semantics = [#tpu.dimension_semantics<parallel>], iteration_bounds = array<i64: 2>, scalar_prefetch = 0 : i64, scratch_operands = 1 : i64, tpu.core_type = #tpu.core_type<tc>, window_params = [{transform_indices = @transform_0, window_bounds = array<i64: 256, 27>}, {pipeline_mode = #tpu.pipeline_mode<synchronous>, transform_indices = @transform_1, window_bounds = array<i64: 27, 128>}, {pipeline_mode = #tpu.pipeline_mode<synchronous>, transform_indices = @transform_2, window_bounds = array<i64: 1, 128>}, {transform_indices = @transform_3, window_bounds = array<i64: 1, 36, 128>}]} {
    %c0 = arith.constant 0 : index
    %c0_0 = arith.constant 0 : index
    %0 = vector.load %arg1[%c0, %c0_0] : memref<256x27xf32, #tpu.memory_space<vmem>>, vector<256x27xf32>
    %c0_1 = arith.constant 0 : index
    %c0_2 = arith.constant 0 : index
    %1 = vector.load %arg2[%c0_1, %c0_2] : memref<27x128xf32, #tpu.memory_space<vmem>>, vector<27x128xf32>
    %cst = arith.constant dense<0.000000e+00> : vector<256x128xf32>
    %2 = tpu.matmul %0, %1, %cst {dimension_numbers = #tpu.dot_dimension_numbers<[1], [0], [0], [1], [0, 0, 1, 1], [], []>} : vector<256x27xf32>, vector<27x128xf32>, vector<256x128xf32> -> vector<256x128xf32>
    %c0_3 = arith.constant 0 : index
    %c0_4 = arith.constant 0 : index
    %3 = vector.load %arg3[%c0_3, %c0_4] : memref<1x128xf32, #tpu.memory_space<vmem>>, vector<1x128xf32>
    %4 = vector.broadcast %3 : vector<1x128xf32> to vector<256x128xf32>
    %5 = arith.addf %2, %4 : vector<256x128xf32>
    %6 = vector.shape_cast %5 : vector<256x128xf32> to vector<1x16x16x128xf32>
    %cst_5 = arith.constant 0xFF800000 : f32
    %7 = vector.broadcast %cst_5 : f32 to vector<1x16x128xf32>
    %cst_6 = arith.constant 0xFF800000 : f32
    %8 = vector.broadcast %cst_6 : f32 to vector<6x1x128xf32>
    %9 = vector.shape_cast %6 : vector<1x16x16x128xf32> to vector<16x16x128xf32>
    %10 = tpu.concatenate %7, %9, %7 in 0 : vector<1x16x128xf32>, vector<16x16x128xf32>, vector<1x16x128xf32> -> vector<18x16x128xf32>
    %11 = vector.shape_cast %10 : vector<18x16x128xf32> to vector<6x3x16x128xf32>
    %12 = vector.extract_strided_slice %11 {offsets = [0, 0, 0, 0], sizes = [6, 1, 16, 128], strides = [1, 1, 1, 1]} : vector<6x3x16x128xf32> to vector<6x1x16x128xf32>
    %13 = vector.shape_cast %12 : vector<6x1x16x128xf32> to vector<6x16x128xf32>
    %14 = vector.extract_strided_slice %11 {offsets = [0, 1, 0, 0], sizes = [6, 1, 16, 128], strides = [1, 1, 1, 1]} : vector<6x3x16x128xf32> to vector<6x1x16x128xf32>
    %15 = vector.shape_cast %14 : vector<6x1x16x128xf32> to vector<6x16x128xf32>
    %16 = arith.maximumf %13, %15 : vector<6x16x128xf32>
    %17 = vector.extract_strided_slice %11 {offsets = [0, 2, 0, 0], sizes = [6, 1, 16, 128], strides = [1, 1, 1, 1]} : vector<6x3x16x128xf32> to vector<6x1x16x128xf32>
    %18 = vector.shape_cast %17 : vector<6x1x16x128xf32> to vector<6x16x128xf32>
    %19 = arith.maximumf %16, %18 : vector<6x16x128xf32>
    %20 = tpu.concatenate %8, %19, %8 in 1 : vector<6x1x128xf32>, vector<6x16x128xf32>, vector<6x1x128xf32> -> vector<6x18x128xf32>
    %21 = vector.shape_cast %20 : vector<6x18x128xf32> to vector<108x128xf32>
    %c0_7 = arith.constant 0 : index
    %c0_8 = arith.constant 0 : index
    %22 = vector.load %arg5[%c0_7, %c0_8] : memref<108x128xf32, #tpu.memory_space<vmem>>, vector<108x128xf32>
    tpu.vector_store %arg5[%c0_7, %c0_8], %21 {strides = array<i32>} : memref<108x128xf32, #tpu.memory_space<vmem>>, vector<108x128xf32>,
    %c0_9 = arith.constant 0 : index
    %c0_10 = arith.constant 0 : index
    %23 = tpu.strided_load %arg5[%c0_9, %c0_10] {strides = array<i32: 3, 1>} : memref<108x128xf32, #tpu.memory_space<vmem>>, vector<36x128xf32>
    %c1 = arith.constant 1 : index
    %c0_11 = arith.constant 0 : index
    %24 = tpu.strided_load %arg5[%c1, %c0_11] {strides = array<i32: 3, 1>} : memref<108x128xf32, #tpu.memory_space<vmem>>, vector<36x128xf32>
    %c2 = arith.constant 2 : index
    %c0_12 = arith.constant 0 : index
    %25 = tpu.strided_load %arg5[%c2, %c0_12] {strides = array<i32: 3, 1>} : memref<108x128xf32, #tpu.memory_space<vmem>>, vector<36x128xf32>
    %26 = arith.maximumf %23, %24 : vector<36x128xf32>
    %27 = arith.maximumf %26, %25 : vector<36x128xf32>
    %28 = vector.shape_cast %27 : vector<36x128xf32> to vector<1x36x128xf32>
    %c0_13 = arith.constant 0 : index
    %c0_14 = arith.constant 0 : index
    %c0_15 = arith.constant 0 : index
    %29 = vector.load %arg4[%c0_13, %c0_14, %c0_15] : memref<1x36x128xf32, #tpu.memory_space<vmem>>, vector<1x36x128xf32>
    tpu.vector_store %arg4[%c0_13, %c0_14, %c0_15], %28 {strides = array<i32>} : memref<1x36x128xf32, #tpu.memory_space<vmem>>, vector<1x36x128xf32>,
    return
  }
  func.func @transform_0(%arg0: i32) -> (i32, i32) {
    %c0_i32 = arith.constant 0 : i32
    %c0_i32_0 = arith.constant 0 : i32
    return %arg0, %c0_i32 : i32, i32
  }
  func.func @transform_1(%arg0: i32) -> (i32, i32) {
    %c0_i32 = arith.constant 0 : i32
    %c0_i32_0 = arith.constant 0 : i32
    %c0_i32_1 = arith.constant 0 : i32
    return %c0_i32, %c0_i32_0 : i32, i32
  }
  func.func @transform_2(%arg0: i32) -> (i32, i32) {
    %c0_i32 = arith.constant 0 : i32
    %c0_i32_0 = arith.constant 0 : i32
    %c0_i32_1 = arith.constant 0 : i32
    return %c0_i32, %c0_i32_0 : i32, i32
  }
  func.func @transform_3(%arg0: i32) -> (i32, i32, i32) {
    %c0_i32 = arith.constant 0 : i32
    %c0_i32_0 = arith.constant 0 : i32
    %c0_i32_1 = arith.constant 0 : i32
    return %arg0, %c0_i32, %c0_i32_0 : i32, i32, i32
  }
}

</mosaic_0001>

<llo_original>
// kernel: tpu_custom_call.1
$region0: #{tpu_custom_call.1}
  #allocation0 [shape = 'u32[]', space=smem, size = 0x4, offset = 0x4, fixed_abs, tag = 'smem constant byte address 0x4 - core index']
  #allocation1 [shape = 'u32[144,128]{1,0:T(1,128)}', space=vmem, size = 0x12000, scoped, tag = 'internal scratch']
  #allocation2 [shape = 'f32[108,128]{1,0:T(8,128)}', space=vmem, size = 0xe000, scoped, tag = 'scratch operand']
  %s0 = inlined_call_operand.vmem [shape: f32[512,27], index: 0, kind: input, shape index: {}]
  %s1 = inlined_call_operand.vmem [shape: f32[27,128], index: 1, kind: input, shape index: {}]
  %s2 = inlined_call_operand.vmem [shape: f32[1,128], index: 2, kind: input, shape index: {}]
  %s3 = inlined_call_operand.vmem [shape: f32[2,36,128], index: 3, kind: output, shape index: {}]
  %s4 = sld [smem:[#allocation0]]
  $region45: #{tpu_custom_call.1} parent=0
    _
  %s6 = ssub.s32 1, %s4
  %s7 = scalar_select 0, %s6, %s4
  loop: start=0, step=1, limit=4
  $region2: #{tpu_custom_call.1} parent=0 // loop_pre_header
    _
  $region3: #{tpu_custom_call.1} parent=0 // loop_header
    %s9 = sphi 0, %s13
    %p10 = scmp.ge.s32.totalorder %s9, 4
    %s19 = sphi 0, %s21
    %s22 = sphi 0, %s19
    %s23 = sphi 0, %s22
    %s39 = sphi 0, %s23
    %s43 = sphi 0, %s43
    %s45 = sphi 0, %s43
    %s46 = sphi 0, %s45
    %s60 = sphi 0, %s46
    %s64 = sphi 0, %s64
    %s66 = sphi 0, %s64
    %s67 = sphi 0, %s66
    %s81 = sphi 0, %s67
    %s87 = sphi 0, %s89
    %s90 = sphi 0, %s87
    %s91 = sphi 0, %s90
    %s107 = sphi 0, %s91
  $region4: #{tpu_custom_call.1} parent=0 // loop_header_branch
    %12 = sbr.rel (%p10) target = $region8
  $region5: #{tpu_custom_call.1} parent=0 // loop_body
    %s14 = ssub.s32 %s9, 1
    %s15 = ssub.s32 %s9, 2
    %s16 = sadd.s32 %s9, 1
    %s17 = ssub.s32 %s9, %s16
    %p18 = scmp.eq.s32.totalorder %s17, 0
    %s20 = sadd.s32 %s19, 1
    %s21 = scalar_select %p18, %s19, %s20
    %p24 = pneg %p18
    %p25 = scmp.eq.s32.totalorder %s9, 1
    %p26 = por %p24, %p25
    %p27 = scmp.ne.s32.totalorder %s19, %s22
    %p28 = scmp.eq.s32.totalorder %s9, 0
    %p29 = por %p27, %p28
    %p30 = scmp.ne.s32.totalorder %s19, %s22
    %p31 = scmp.eq.s32.totalorder %s14, 1
    %p32 = por %p30, %p31
    %p33 = scmp.ne.s32.totalorder %s22, %s23
    %p34 = scmp.eq.s32.totalorder %s14, 0
    %p35 = por %p33, %p34
    %p36 = scmp.ne.s32.totalorder %s22, %s23
    %p37 = scmp.eq.s32.totalorder %s15, 1
    %p38 = por %p36, %p37
    %p40 = scmp.ne.s32.totalorder %s23, %s39
    %p41 = scmp.eq.s32.totalorder %s15, 0
    %p42 = por %p40, %p41
    %s44 = sadd.s32 %s43, 1
    %p47 = scmp.eq.s32.totalorder %s9, 1
    %p48 = scmp.ne.s32.totalorder %s43, %s45
    %p49 = scmp.eq.s32.totalorder %s9, 0
    %p50 = por %p48, %p49
    %p51 = scmp.ne.s32.totalorder %s43, %s45
    %p52 = scmp.eq.s32.totalorder %s14, 1
    %p53 = por %p51, %p52
    %p54 = scmp.ne.s32.totalorder %s45, %s46
    %p55 = scmp.eq.s32.totalorder %s14, 0
    %p56 = por %p54, %p55
    %p57 = scmp.ne.s32.totalorder %s45, %s46
    %p58 = scmp.eq.s32.totalorder %s15, 1
    %p59 = por %p57, %p58
    %p61 = scmp.ne.s32.totalorder %s46, %s60
    %p62 = scmp.eq.s32.totalorder %s15, 0
    %p63 = por %p61, %p62
    %s65 = sadd.s32 %s64, 1
    %p68 = scmp.eq.s32.totalorder %s9, 1
    %p69 = scmp.ne.s32.totalorder %s64, %s66
    %p70 = scmp.eq.s32.totalorder %s9, 0
    %p71 = por %p69, %p70
    %p72 = scmp.ne.s32.totalorder %s64, %s66
    %p73 = scmp.eq.s32.totalorder %s14, 1
    %p74 = por %p72, %p73
    %p75 = scmp.ne.s32.totalorder %s66, %s67
    %p76 = scmp.eq.s32.totalorder %s14, 0
    %p77 = por %p75, %p76
    %p78 = scmp.ne.s32.totalorder %s66, %s67
    %p79 = scmp.eq.s32.totalorder %s15, 1
    %p80 = por %p78, %p79
    %p82 = scmp.ne.s32.totalorder %s67, %s81
    %p83 = scmp.eq.s32.totalorder %s15, 0
    %p84 = por %p82, %p83
    %s85 = ssub.s32 %s9, %s16
    %p86 = scmp.eq.s32.totalorder %s85, 0
    %s88 = sadd.s32 %s87, 1
    %s89 = scalar_select %p86, %s87, %s88
    %p92 = pneg %p86
    %p93 = scmp.eq.s32.totalorder %s9, 1
    %p94 = por %p92, %p93
    %p95 = scmp.ne.s32.totalorder %s87, %s90
    %p96 = scmp.eq.s32.totalorder %s9, 0
    %p97 = por %p95, %p96
    %p98 = scmp.ne.s32.totalorder %s87, %s90
    %p99 = scmp.eq.s32.totalorder %s14, 1
    %p100 = por %p98, %p99
    %p101 = scmp.ne.s32.totalorder %s90, %s91
    %p102 = scmp.eq.s32.totalorder %s14, 0
    %p103 = por %p101, %p102
    %p104 = scmp.ne.s32.totalorder %s90, %s91
    %p105 = scmp.eq.s32.totalorder %s15, 1
    %p106 = por %p104, %p105
    %p108 = scmp.ne.s32.totalorder %s91, %s107
    %p109 = scmp.eq.s32.totalorder %s15, 0
    %p110 = por %p108, %p109
    %p111 = scmp.le.s32.totalorder 1, %s9
    %p112 = scmp.lt.s32.totalorder %s9, 3
    %p113 = pnand %p111, %p112
    %p114 = pneg %p113
    // Predicated region
    $region9: #{tpu_custom_call.1} parent=5 // pred_check
      _
    $region10: #{tpu_custom_call.1} parent=5 // pred_check_branch
      %116 = sbr.rel (%p113) target = $region12
    $region11: #{tpu_custom_call.1} parent=5 // pred_region
      %s117 = ssub.s32 %s9, 1
      // Predicated region
      $region13: #{tpu_custom_call.1} parent=11 // pred_check
        %p118 = pneg %p56
      $region14: #{tpu_custom_call.1} parent=11 // pred_check_branch
        %120 = sbr.rel (%p118) target = $region16
      $region15: #{tpu_custom_call.1} parent=11 // pred_region
        _
      $region16: #{tpu_custom_call.1} parent=11 // pred_fallthru
        _
      // Predicated region
      $region17: #{tpu_custom_call.1} parent=11 // pred_check
        %p121 = pneg %p77
      $region18: #{tpu_custom_call.1} parent=11 // pred_check_branch
        %123 = sbr.rel (%p121) target = $region20
      $region19: #{tpu_custom_call.1} parent=11 // pred_region
        _
      $region20: #{tpu_custom_call.1} parent=11 // pred_fallthru
        _
    $region12: #{tpu_custom_call.1} parent=5 // pred_fallthru
      _
    %p124 = scmp.lt.s32.totalorder %s9, 2
    // Predicated region
    $region21: #{tpu_custom_call.1} parent=5 // pred_check
      %p125 = pneg %p124
    $region22: #{tpu_custom_call.1} parent=5 // pred_check_branch
      %127 = sbr.rel (%p125) target = $region24
    $region23: #{tpu_custom_call.1} parent=5 // pred_region
      // Predicated region
      $region25: #{tpu_custom_call.1} parent=23 // pred_check
        %p128 = pneg %p29
      $region26: #{tpu_custom_call.1} parent=23 // pred_check_branch
        %130 = sbr.rel (%p128) target = $region28
      $region27: #{tpu_custom_call.1} parent=23 // pred_region
        %s131 = smul.u32 32, %s9
        %p132 = scmp.lt.s32.totalorder %s131, 63
        %s133 = scalar_select %p132, %s131, 63
        %s134 = smul.addr %s133, 8
        %s135 = scalar_lea.vmem %s0, %s134
        %s136 = smul.u32 32, %s9
      $region28: #{tpu_custom_call.1} parent=23 // pred_fallthru
        _
    $region24: #{tpu_custom_call.1} parent=5 // pred_fallthru
      _
    %p137 = scmp.le.s32.totalorder 1, %s9
    %p138 = scmp.lt.s32.totalorder %s9, 3
    %p139 = pnand %p137, %p138
    %p140 = pneg %p139
    // Predicated region
    $region29: #{tpu_custom_call.1} parent=5 // pred_check
      _
    $region30: #{tpu_custom_call.1} parent=5 // pred_check_branch
      %142 = sbr.rel (%p139) target = $region32
    $region31: #{tpu_custom_call.1} parent=5 // pred_region
      %s143 = ssub.s32 %s9, 1
      %s144 = smul.u32 32, %s14
      %p145 = scmp.lt.s32.totalorder %s144, 63
      %s146 = scalar_select %p145, %s144, 63
      %s147 = smul.addr %s146, 8
      %s148 = scalar_lea.vmem %s0, %s147
      %p149 = pneg %p35
      %p150 = pneg %p32
      %p151 = pneg %p56
      %p152 = pneg %p53
      %p153 = pneg %p77
      %p154 = pneg %p74
      %p155 = pneg %p103
      %p156 = pneg %p100
      %p157 = scmp.lt.s32.totalorder %s14, 1
      %s158 = scalar_select %p157, %s14, 1
      %s159 = smul.addr %s158, 5
      %s160 = smul.addr %s159, 8
      %s161 = scalar_lea.vmem %s3, %s160
      %s162 = smul.u32 32, %s14
      %p163 = scmp.lt.s32.totalorder %s162, 63
      %s164 = scalar_select %p163, %s162, 63
      %s165 = smul.addr %s164, 8
      %s166 = scalar_lea.vmem %s0, %s165
      %s167 = smul.u32 32, %s14
      %p168 = scmp.lt.s32.totalorder %s14, 1
      %s169 = scalar_select %p168, %s14, 1
      %s170 = smul.addr %s169, 5
      %s171 = smul.addr %s170, 8
      %s172 = scalar_lea.vmem %s3, %s171
      %v173 = vld [vmem:[%s166] sm:$0xff]
      %v174 = vld [vmem:[%s166 + $0x8] sm:$0xff]
      %v175 = vld [vmem:[%s166 + $0x10] sm:$0xff]
      %v176 = vld [vmem:[%s166 + $0x18] sm:$0xff]
      %v177 = vld [vmem:[%s166 + $0x20] sm:$0xff]
      %v178 = vld [vmem:[%s166 + $0x28] sm:$0xff]
      %v179 = vld [vmem:[%s166 + $0x30] sm:$0xff]
      %v180 = vld [vmem:[%s166 + $0x38] sm:$0xff]
      %v181 = vld [vmem:[%s166 + $0x40] sm:$0xff]
      %v182 = vld [vmem:[%s166 + $0x48] sm:$0xff]
      %v183 = vld [vmem:[%s166 + $0x50] sm:$0xff]
      %v184 = vld [vmem:[%s166 + $0x58] sm:$0xff]
      %v185 = vld [vmem:[%s166 + $0x60] sm:$0xff]
      %v186 = vld [vmem:[%s166 + $0x68] sm:$0xff]
      %v187 = vld [vmem:[%s166 + $0x70] sm:$0xff]
      %v188 = vld [vmem:[%s166 + $0x78] sm:$0xff]
      %v189 = vld [vmem:[%s166 + $0x80] sm:$0xff]
      %v190 = vld [vmem:[%s166 + $0x88] sm:$0xff]
      %v191 = vld [vmem:[%s166 + $0x90] sm:$0xff]
      %v192 = vld [vmem:[%s166 + $0x98] sm:$0xff]
      %v193 = vld [vmem:[%s166 + $0xa0] sm:$0xff]
      %v194 = vld [vmem:[%s166 + $0xa8] sm:$0xff]
      %v195 = vld [vmem:[%s166 + $0xb0] sm:$0xff]
      %v196 = vld [vmem:[%s166 + $0xb8] sm:$0xff]
      %v197 = vld [vmem:[%s166 + $0xc0] sm:$0xff]
      %v198 = vld [vmem:[%s166 + $0xc8] sm:$0xff]
      %v199 = vld [vmem:[%s166 + $0xd0] sm:$0xff]
      %v200 = vld [vmem:[%s166 + $0xd8] sm:$0xff]
      %v201 = vld [vmem:[%s166 + $0xe0] sm:$0xff]
      %v202 = vld [vmem:[%s166 + $0xe8] sm:$0xff]
      %v203 = vld [vmem:[%s166 + $0xf0] sm:$0xff]
      %v204 = vld [vmem:[%s166 + $0xf8] sm:$0xff]
      %v205 = vld [vmem:[%s1] sm:$0xff]
      %v206 = vld [vmem:[%s1 + $0x8] sm:$0xff]
      %v207 = vld [vmem:[%s1 + $0x10] sm:$0xff]
      %v208 = vld [vmem:[%s1 + $0x18] sm:$0x7]
      %v209 = vld [vmem:[%s2] sm:$0x1]
      %v211 = vlaneseq
      %v212 = vshrl.u32 %v211, 7
      %v213 = vsub.s32 0, %v212
      %v214 = vrot.slane %v209, %v213
      %vm216 = vcmask 220160
      %v218 = vsel %vm216, %v173, 0
      %v221 = vsel %vm216, %v174, 0
      %v224 = vsel %vm216, %v175, 0
      %v227 = vsel %vm216, %v176, 0
      %v230 = vsel %vm216, %v177, 0
      %v233 = vsel %vm216, %v178, 0
      %v236 = vsel %vm216, %v179, 0
      %v239 = vsel %vm216, %v180, 0
      %v242 = vsel %vm216, %v181, 0
      %v245 = vsel %vm216, %v182, 0
      %v248 = vsel %vm216, %v183, 0
      %v251 = vsel %vm216, %v184, 0
      %v254 = vsel %vm216, %v185, 0
      %v257 = vsel %vm216, %v186, 0
      %v260 = vsel %vm216, %v187, 0
      %v263 = vsel %vm216, %v188, 0
      %v266 = vsel %vm216, %v189, 0
      %v269 = vsel %vm216, %v190, 0
      %v272 = vsel %vm216, %v191, 0
      %v275 = vsel %vm216, %v192, 0
      %v278 = vsel %vm216, %v193, 0
      %v281 = vsel %vm216, %v194, 0
      %v284 = vsel %vm216, %v195, 0
      %v287 = vsel %vm216, %v196, 0
      %v290 = vsel %vm216, %v197, 0
      %v293 = vsel %vm216, %v198, 0
      %v296 = vsel %vm216, %v199, 0
      %v299 = vsel %vm216, %v200, 0
      %v302 = vsel %vm216, %v201, 0
      %v305 = vsel %vm216, %v202, 0
      %v308 = vsel %vm216, %v203, 0
      %v311 = vsel %vm216, %v204, 0
      %vm313 = vcmask 1042432
      %v315 = vsel %vm313, %v208, 0
      %317 = vmatprep.subr.mxu0 0.0
      %318 = vmatpush1.msra.mxu0 %v205
      %319 = vmatprep.subr.mxu0 0.0
      %320 = vmatpush1.msra.mxu0 %v206
      %321 = vmatprep.subr.mxu0 0.0
      %322 = vmatpush1.msra.mxu0 %v207
      %323 = vmatprep.subr.mxu0 0.0
      %324 = vmatpush1.msra.mxu0 %v315
      %325 = vmatprep.subr.mxu0 0.0
      %326 = vmatpush1.msra.mxu0 0.0
      %327 = vmatprep.subr.mxu0 0.0
      %328 = vmatpush1.msra.mxu0 0.0
      %329 = vmatprep.subr.mxu0 0.0
      %330 = vmatpush1.msra.mxu0 0.0
      %331 = vmatprep.subr.mxu0 0.0
      %332 = vmatpush1.msra.mxu0 0.0
      %333 = vmatprep.subr.mxu0 0.0
      %334 = vmatpush1.msra.mxu0 0.0
      %335 = vmatprep.subr.mxu0 0.0
      %336 = vmatpush1.msra.mxu0 0.0
      %337 = vmatprep.subr.mxu0 0.0
      %338 = vmatpush1.msra.mxu0 0.0
      %339 = vmatprep.subr.mxu0 0.0
      %340 = vmatpush1.msra.mxu0 0.0
      %341 = vmatprep.subr.mxu0 0.0
      %342 = vmatpush1.msra.mxu0 0.0
      %343 = vmatprep.subr.mxu0 0.0
      %344 = vmatpush1.msra.mxu0 0.0
      %345 = vmatprep.subr.mxu0 0.0
      %346 = vmatpush1.msra.mxu0 0.0
      %347 = vmatprep.subr.mxu0 0.0
      %348 = vmatpush1.msra.mxu0 0.0
      %349 = vmatprep.subr.mxu0 0.0
      %350 = vmatpush1.msra.mxu0 0.0
      %351 = vmatprep.subr.mxu0 0.0
      %352 = vmatpush1.msra.mxu0 0.0
      %353 = vmatprep.subr.mxu0 0.0
      %354 = vmatpush1.msra.mxu0 0.0
      %355 = vmatprep.subr.mxu0 0.0
      %356 = vmatpush1.msra.mxu0 0.0
      %357 = vmatprep.subr.mxu0 0.0
      %358 = vmatpush1.msra.mxu0 0.0
      %359 = vmatprep.subr.mxu0 0.0
      %360 = vmatpush1.msra.mxu0 0.0
      %361 = vmatprep.subr.mxu0 0.0
      %362 = vmatpush1.msra.mxu0 0.0
      %363 = vmatprep.subr.mxu0 0.0
      %364 = vmatpush1.msra.mxu0 0.0
      %365 = vmatprep.subr.mxu0 0.0
      %366 = vmatpush1.msra.mxu0 0.0
      %367 = vmatprep.subr.mxu0 0.0
      %368 = vmatpush1.msra.mxu0 0.0
      %369 = vmatprep.subr.mxu0 0.0
      %370 = vmatpush1.msra.mxu0 0.0
      %371 = vmatprep.subr.mxu0 0.0
      %372 = vmatpush1.msra.mxu0 0.0
      %373 = vmatprep.subr.mxu0 0.0
      %374 = vmatpush1.msra.mxu0 0.0
      %375 = vmatprep.subr.mxu0 0.0
      %376 = vmatpush1.msra.mxu0 0.0
      %377 = vmatprep.subr.mxu0 0.0
      %378 = vmatpush1.msra.mxu0 0.0
      %379 = vmatprep.subr.mxu0 0.0
      %380 = vmatpush1.msra.mxu0 0.0
      %381 = vmatprep.mubr.f32.mxu0 0.0
      %382 = vmatmul.mubr.f32.gmra.mrb[0].mxu0 %v218
      %v383 = vpop.f32.mrb[0].mxu0
      %v384 = vadd.f32 %v214, %v383
      %v385 = vpop.f32.mrb[0].mxu0
      %386 = vmatprep.mubr.f32.mxu0 0.0
      %387 = vmatmul.mubr.f32.gmra.mrb[0].mxu0 %v221
      %v388 = vpop.f32.mrb[0].mxu0
      %v389 = vadd.f32 %v214, %v388
      %v390 = vpop.f32.mrb[0].mxu0
      %391 = vmatprep.mubr.f32.mxu0 0.0
      %392 = vmatmul.mubr.f32.gmra.mrb[0].mxu0 %v224
      %v393 = vpop.f32.mrb[0].mxu0
      %v394 = vadd.f32 %v214, %v393
      %v395 = vpop.f32.mrb[0].mxu0
      %396 = vmatprep.mubr.f32.mxu0 0.0
      %397 = vmatmul.mubr.f32.gmra.mrb[0].mxu0 %v227
      %v398 = vpop.f32.mrb[0].mxu0
      %v399 = vadd.f32 %v214, %v398
      %v400 = vpop.f32.mrb[0].mxu0
      %401 = vmatprep.mubr.f32.mxu0 0.0
      %402 = vmatmul.mubr.f32.gmra.mrb[0].mxu0 %v230
      %v403 = vpop.f32.mrb[0].mxu0
      %v404 = vadd.f32 %v214, %v403
      %v405 = vpop.f32.mrb[0].mxu0
      %406 = vmatprep.mubr.f32.mxu0 0.0
      %407 = vmatmul.mubr.f32.gmra.mrb[0].mxu0 %v233
      %v408 = vpop.f32.mrb[0].mxu0
      %v409 = vadd.f32 %v214, %v408
      %v410 = vpop.f32.mrb[0].mxu0
      %411 = vmatprep.mubr.f32.mxu0 0.0
      %412 = vmatmul.mubr.f32.gmra.mrb[0].mxu0 %v236
      %v413 = vpop.f32.mrb[0].mxu0
      %v414 = vadd.f32 %v214, %v413
      %v415 = vpop.f32.mrb[0].mxu0
      %416 = vmatprep.mubr.f32.mxu0 0.0
      %417 = vmatmul.mubr.f32.gmra.mrb[0].mxu0 %v239
      %v418 = vpop.f32.mrb[0].mxu0
      %v419 = vadd.f32 %v214, %v418
      %v420 = vpop.f32.mrb[0].mxu0
      %421 = vmatprep.mubr.f32.mxu0 0.0
      %422 = vmatmul.mubr.f32.gmra.mrb[0].mxu0 %v242
      %v423 = vpop.f32.mrb[0].mxu0
      %v424 = vadd.f32 %v214, %v423
      %v425 = vpop.f32.mrb[0].mxu0
      %426 = vmatprep.mubr.f32.mxu0 0.0
      %427 = vmatmul.mubr.f32.gmra.mrb[0].mxu0 %v245
      %v428 = vpop.f32.mrb[0].mxu0
      %v429 = vadd.f32 %v214, %v428
      %v430 = vpop.f32.mrb[0].mxu0
      %431 = vmatprep.mubr.f32.mxu0 0.0
      %432 = vmatmul.mubr.f32.gmra.mrb[0].mxu0 %v248
      %v433 = vpop.f32.mrb[0].mxu0
      %v434 = vadd.f32 %v214, %v433
      %v435 = vpop.f32.mrb[0].mxu0
      %436 = vmatprep.mubr.f32.mxu0 0.0
      %437 = vmatmul.mubr.f32.gmra.mrb[0].mxu0 %v251
      %v438 = vpop.f32.mrb[0].mxu0
      %v439 = vadd.f32 %v214, %v438
      %v440 = vpop.f32.mrb[0].mxu0
      %441 = vmatprep.mubr.f32.mxu0 0.0
      %442 = vmatmul.mubr.f32.gmra.mrb[0].mxu0 %v254
      %v443 = vpop.f32.mrb[0].mxu0
      %v444 = vadd.f32 %v214, %v443
      %v445 = vpop.f32.mrb[0].mxu0
      %446 = vmatprep.mubr.f32.mxu0 0.0
      %447 = vmatmul.mubr.f32.gmra.mrb[0].mxu0 %v257
      %v448 = vpop.f32.mrb[0].mxu0
      %v449 = vadd.f32 %v214, %v448
      %v450 = vpop.f32.mrb[0].mxu0
      %451 = vmatprep.mubr.f32.mxu0 0.0
      %452 = vmatmul.mubr.f32.gmra.mrb[0].mxu0 %v260
      %v453 = vpop.f32.mrb[0].mxu0
      %v454 = vadd.f32 %v214, %v453
      %v455 = vpop.f32.mrb[0].mxu0
      %456 = vmatprep.mubr.f32.mxu0 0.0
      %457 = vmatmul.mubr.f32.gmra.mrb[0].mxu0 %v263
      %v458 = vpop.f32.mrb[0].mxu0
      %v459 = vadd.f32 %v214, %v458
      %v460 = vpop.f32.mrb[0].mxu0
      %461 = vmatprep.mubr.f32.mxu0 0.0
      %462 = vmatmul.mubr.f32.gmra.mrb[0].mxu0 %v266
      %v463 = vpop.f32.mrb[0].mxu0
      %v464 = vadd.f32 %v214, %v463
      %v465 = vpop.f32.mrb[0].mxu0
      %466 = vmatprep.mubr.f32.mxu0 0.0
      %467 = vmatmul.mubr.f32.gmra.mrb[0].mxu0 %v269
      %v468 = vpop.f32.mrb[0].mxu0
      %v469 = vadd.f32 %v214, %v468
      %v470 = vpop.f32.mrb[0].mxu0
      %471 = vmatprep.mubr.f32.mxu0 0.0
      %472 = vmatmul.mubr.f32.gmra.mrb[0].mxu0 %v272
      %v473 = vpop.f32.mrb[0].mxu0
      %v474 = vadd.f32 %v214, %v473
      %v475 = vpop.f32.mrb[0].mxu0
      %476 = vmatprep.mubr.f32.mxu0 0.0
      %477 = vmatmul.mubr.f32.gmra.mrb[0].mxu0 %v275
      %v478 = vpop.f32.mrb[0].mxu0
      %v479 = vadd.f32 %v214, %v478
      %v480 = vpop.f32.mrb[0].mxu0
      %481 = vmatprep.mubr.f32.mxu0 0.0
      %482 = vmatmul.mubr.f32.gmra.mrb[0].mxu0 %v278
      %v483 = vpop.f32.mrb[0].mxu0
      %v484 = vadd.f32 %v214, %v483
      %v485 = vpop.f32.mrb[0].mxu0
      %486 = vmatprep.mubr.f32.mxu0 0.0
      %487 = vmatmul.mubr.f32.gmra.mrb[0].mxu0 %v281
      %v488 = vpop.f32.mrb[0].mxu0
      %v489 = vadd.f32 %v214, %v488
      %v490 = vpop.f32.mrb[0].mxu0
      %491 = vmatprep.mubr.f32.mxu0 0.0
      %492 = vmatmul.mubr.f32.gmra.mrb[0].mxu0 %v284
      %v493 = vpop.f32.mrb[0].mxu0
      %v494 = vadd.f32 %v214, %v493
      %v495 = vpop.f32.mrb[0].mxu0
      %496 = vmatprep.mubr.f32.mxu0 0.0
      %497 = vmatmul.mubr.f32.gmra.mrb[0].mxu0 %v287
      %v498 = vpop.f32.mrb[0].mxu0
      %v499 = vadd.f32 %v214, %v498
      %v500 = vpop.f32.mrb[0].mxu0
      %501 = vmatprep.mubr.f32.mxu0 0.0
      %502 = vmatmul.mubr.f32.gmra.mrb[0].mxu0 %v290
      %v503 = vpop.f32.mrb[0].mxu0
      %v504 = vadd.f32 %v214, %v503
      %v505 = vpop.f32.mrb[0].mxu0
      %506 = vmatprep.mubr.f32.mxu0 0.0
      %507 = vmatmul.mubr.f32.gmra.mrb[0].mxu0 %v293
      %v508 = vpop.f32.mrb[0].mxu0
      %v509 = vadd.f32 %v214, %v508
      %v510 = vpop.f32.mrb[0].mxu0
      %511 = vmatprep.mubr.f32.mxu0 0.0
      %512 = vmatmul.mubr.f32.gmra.mrb[0].mxu0 %v296
      %v513 = vpop.f32.mrb[0].mxu0
      %v514 = vadd.f32 %v214, %v513
      %v515 = vpop.f32.mrb[0].mxu0
      %516 = vmatprep.mubr.f32.mxu0 0.0
      %517 = vmatmul.mubr.f32.gmra.mrb[0].mxu0 %v299
      %v518 = vpop.f32.mrb[0].mxu0
      %v519 = vadd.f32 %v214, %v518
      %v520 = vpop.f32.mrb[0].mxu0
      %521 = vmatprep.mubr.f32.mxu0 0.0
      %522 = vmatmul.mubr.f32.gmra.mrb[0].mxu0 %v302
      %v523 = vpop.f32.mrb[0].mxu0
      %v524 = vadd.f32 %v214, %v523
      %v525 = vpop.f32.mrb[0].mxu0
      %526 = vmatprep.mubr.f32.mxu0 0.0
      %527 = vmatmul.mubr.f32.gmra.mrb[0].mxu0 %v305
      %v528 = vpop.f32.mrb[0].mxu0
      %v529 = vadd.f32 %v214, %v528
      %v530 = vpop.f32.mrb[0].mxu0
      %531 = vmatprep.mubr.f32.mxu0 0.0
      %532 = vmatmul.mubr.f32.gmra.mrb[0].mxu0 %v308
      %v533 = vpop.f32.mrb[0].mxu0
      %v534 = vadd.f32 %v214, %v533
      %v535 = vpop.f32.mrb[0].mxu0
      %536 = vmatprep.mubr.f32.mxu0 0.0
      %537 = vmatmul.mubr.f32.gmra.mrb[0].mxu0 %v311
      %v538 = vpop.f32.mrb[0].mxu0
      %v539 = vadd.f32 %v214, %v538
      %v540 = vpop.f32.mrb[0].mxu0
      %541 = vdwg.mxu0
      %v542 = vmax.f32 %v404, %v414
      %v543 = vmax.f32 %v409, %v419
      %v544 = vmax.f32 %v434, %v444
      %v545 = vmax.f32 %v439, %v449
      %v546 = vmax.f32 %v464, %v474
      %v547 = vmax.f32 %v469, %v479
      %v548 = vmax.f32 %v494, %v504
      %v549 = vmax.f32 %v499, %v509
      %v550 = vmax.f32 %v524, %v534
      %v551 = vmax.f32 %v529, %v539
      %v552 = vmax.f32 %v384, %v394
      %v553 = vmax.f32 %v389, %v399
      %v554 = vmax.f32 %v542, %v424
      %v555 = vmax.f32 %v543, %v429
      %v556 = vmax.f32 %v544, %v454
      %v557 = vmax.f32 %v545, %v459
      %v558 = vmax.f32 %v546, %v484
      %v559 = vmax.f32 %v547, %v489
      %v560 = vmax.f32 %v548, %v514
      %v561 = vmax.f32 %v549, %v519
      %vm574 = vcmask 1040384
      %v575 = vrot.slane %v552, 7
      %v576 = vrot.slane %v553, 7
      %v577 = vsel %vm574, %v575, %v576
      %v578 = vrot.slane %v554, 7
      %v579 = vrot.slane %v555, 7
      %v580 = vsel %vm574, %v578, %v579
      %v581 = vrot.slane %v556, 7
      %v582 = vrot.slane %v557, 7
      %v583 = vsel %vm574, %v581, %v582
      %v584 = vrot.slane %v558, 7
      %v585 = vrot.slane %v559, 7
      %v586 = vsel %vm574, %v584, %v585
      %v587 = vrot.slane %v560, 7
      %v588 = vrot.slane %v561, 7
      %v589 = vsel %vm574, %v587, %v588
      %v590 = vrot.slane %v550, 7
      %v591 = vrot.slane %v551, 7
      %v592 = vsel %vm574, %v590, %v591
      %v605 = vsel %vm574, -inf, %v575
      %v606 = vsel %vm574, -inf, %v578
      %v607 = vsel %vm574, -inf, %v581
      %v608 = vsel %vm574, -inf, %v584
      %v609 = vsel %vm574, -inf, %v587
      %v610 = vsel %vm574, -inf, %v590
      %v611 = vsel %vm574, %v576, -inf
      %v612 = vsel %vm574, %v579, -inf
      %v613 = vsel %vm574, %v582, -inf
      %v614 = vsel %vm574, %v585, -inf
      %v615 = vsel %vm574, %v588, -inf
      %v616 = vsel %vm574, %v591, -inf
      %v629 = vcombine.high %v605, %v605
      %v631 = vunpack.c.l.s4 1983009808
      %v632 = vunpack.c.0.s8 %v631
      %v633 = vlaneseq
      %v634 = vshrl.u32 %v633, 7
      %v635 = vsub.s32 %v632, %v634
      %v636 = vrot.slane %v605, %v635
      %v638 = vunpack.c.l.s4 1983009808
      %v639 = vunpack.c.0.s8 %v638
      %v640 = vlaneseq
      %v641 = vshrl.u32 %v640, 7
      %v642 = vsub.s32 %v639, %v641
      %v643 = vrot.slane %v629, %v642
      %v644 = vcombine.high %v636, %v636
      %v645 = vcombine.high %v643, %v643
      %v646 = vcombine.high %v577, %v577
      %v648 = vunpack.c.l.s4 1983009808
      %v649 = vunpack.c.0.s8 %v648
      %v650 = vlaneseq
      %v651 = vshrl.u32 %v650, 7
      %v652 = vsub.s32 %v649, %v651
      %v653 = vrot.slane %v577, %v652
      %v655 = vunpack.c.l.s4 1983009808
      %v656 = vunpack.c.0.s8 %v655
      %v657 = vlaneseq
      %v658 = vshrl.u32 %v657, 7
      %v659 = vsub.s32 %v656, %v658
      %v660 = vrot.slane %v646, %v659
      %v661 = vcombine.high %v653, %v653
      %v662 = vcombine.high %v660, %v660
      %v664 = vunpack.c.l.s4 1983009808
      %v665 = vunpack.c.0.s8 %v664
      %v666 = vlaneseq
      %v667 = vshrl.u32 %v666, 7
      %v668 = vsub.s32 %v665, %v667
      %v669 = vrot.slane %v611, %v668
      %v670 = vcombine.high %v606, %v606
      %v672 = vunpack.c.l.s4 1983009808
      %v673 = vunpack.c.0.s8 %v672
      %v674 = vlaneseq
      %v675 = vshrl.u32 %v674, 7
      %v676 = vsub.s32 %v673, %v675
      %v677 = vrot.slane %v606, %v676
      %v679 = vunpack.c.l.s4 1983009808
      %v680 = vunpack.c.0.s8 %v679
      %v681 = vlaneseq
      %v682 = vshrl.u32 %v681, 7
      %v683 = vsub.s32 %v680, %v682
      %v684 = vrot.slane %v670, %v683
      %v685 = vcombine.high %v677, %v677
      %v686 = vcombine.high %v684, %v684
      %v687 = vcombine.high %v580, %v580
      %v689 = vunpack.c.l.s4 1983009808
      %v690 = vunpack.c.0.s8 %v689
      %v691 = vlaneseq
      %v692 = vshrl.u32 %v691, 7
      %v693 = vsub.s32 %v690, %v692
      %v694 = vrot.slane %v580, %v693
      %v696 = vunpack.c.l.s4 1983009808
      %v697 = vunpack.c.0.s8 %v696
      %v698 = vlaneseq
      %v699 = vshrl.u32 %v698, 7
      %v700 = vsub.s32 %v697, %v699
      %v701 = vrot.slane %v687, %v700
      %v702 = vcombine.high %v694, %v694
      %v703 = vcombine.high %v701, %v701
      %v705 = vunpack.c.l.s4 1983009808
      %v706 = vunpack.c.0.s8 %v705
      %v707 = vlaneseq
      %v708 = vshrl.u32 %v707, 7
      %v709 = vsub.s32 %v706, %v708
      %v710 = vrot.slane %v612, %v709
      %v711 = vcombine.high %v607, %v607
      %v713 = vunpack.c.l.s4 1983009808
      %v714 = vunpack.c.0.s8 %v713
      %v715 = vlaneseq
      %v716 = vshrl.u32 %v715, 7
      %v717 = vsub.s32 %v714, %v716
      %v718 = vrot.slane %v607, %v717
      %v720 = vunpack.c.l.s4 1983009808
      %v721 = vunpack.c.0.s8 %v720
      %v722 = vlaneseq
      %v723 = vshrl.u32 %v722, 7
      %v724 = vsub.s32 %v721, %v723
      %v725 = vrot.slane %v711, %v724
      %v726 = vcombine.high %v718, %v718
      %v727 = vcombine.high %v725, %v725
      %v728 = vcombine.high %v583, %v583
      %v730 = vunpack.c.l.s4 1983009808
      %v731 = vunpack.c.0.s8 %v730
      %v732 = vlaneseq
      %v733 = vshrl.u32 %v732, 7
      %v734 = vsub.s32 %v731, %v733
      %v735 = vrot.slane %v583, %v734
      %v737 = vunpack.c.l.s4 1983009808
      %v738 = vunpack.c.0.s8 %v737
      %v739 = vlaneseq
      %v740 = vshrl.u32 %v739, 7
      %v741 = vsub.s32 %v738, %v740
      %v742 = vrot.slane %v728, %v741
      %v743 = vcombine.high %v735, %v735
      %v744 = vcombine.high %v742, %v742
      %v746 = vunpack.c.l.s4 1983009808
      %v747 = vunpack.c.0.s8 %v746
      %v748 = vlaneseq
      %v749 = vshrl.u32 %v748, 7
      %v750 = vsub.s32 %v747, %v749
      %v751 = vrot.slane %v613, %v750
      %v752 = vcombine.high %v608, %v608
      %v754 = vunpack.c.l.s4 1983009808
      %v755 = vunpack.c.0.s8 %v754
      %v756 = vlaneseq
      %v757 = vshrl.u32 %v756, 7
      %v758 = vsub.s32 %v755, %v757
      %v759 = vrot.slane %v608, %v758
      %v761 = vunpack.c.l.s4 1983009808
      %v762 = vunpack.c.0.s8 %v761
      %v763 = vlaneseq
      %v764 = vshrl.u32 %v763, 7
      %v765 = vsub.s32 %v762, %v764
      %v766 = vrot.slane %v752, %v765
      %v767 = vcombine.high %v759, %v759
      %v768 = vcombine.high %v766, %v766
      %v769 = vcombine.high %v586, %v586
      %v771 = vunpack.c.l.s4 1983009808
      %v772 = vunpack.c.0.s8 %v771
      %v773 = vlaneseq
      %v774 = vshrl.u32 %v773, 7
      %v775 = vsub.s32 %v772, %v774
      %v776 = vrot.slane %v586, %v775
      %v778 = vunpack.c.l.s4 1983009808
      %v779 = vunpack.c.0.s8 %v778
      %v780 = vlaneseq
      %v781 = vshrl.u32 %v780, 7
      %v782 = vsub.s32 %v779, %v781
      %v783 = vrot.slane %v769, %v782
      %v784 = vcombine.high %v776, %v776
      %v785 = vcombine.high %v783, %v783
      %v787 = vunpack.c.l.s4 1983009808
      %v788 = vunpack.c.0.s8 %v787
      %v789 = vlaneseq
      %v790 = vshrl.u32 %v789, 7
      %v791 = vsub.s32 %v788, %v790
      %v792 = vrot.slane %v614, %v791
      %v793 = vcombine.high %v609, %v609
      %v795 = vunpack.c.l.s4 1983009808
      %v796 = vunpack.c.0.s8 %v795
      %v797 = vlaneseq
      %v798 = vshrl.u32 %v797, 7
      %v799 = vsub.s32 %v796, %v798
      %v800 = vrot.slane %v609, %v799
      %v802 = vunpack.c.l.s4 1983009808
      %v803 = vunpack.c.0.s8 %v802
      %v804 = vlaneseq
      %v805 = vshrl.u32 %v804, 7
      %v806 = vsub.s32 %v803, %v805
      %v807 = vrot.slane %v793, %v806
      %v808 = vcombine.high %v800, %v800
      %v809 = vcombine.high %v807, %v807
      %v810 = vcombine.high %v589, %v589
      %v812 = vunpack.c.l.s4 1983009808
      %v813 = vunpack.c.0.s8 %v812
      %v814 = vlaneseq
      %v815 = vshrl.u32 %v814, 7
      %v816 = vsub.s32 %v813, %v815
      %v817 = vrot.slane %v589, %v816
      %v819 = vunpack.c.l.s4 1983009808
      %v820 = vunpack.c.0.s8 %v819
      %v821 = vlaneseq
      %v822 = vshrl.u32 %v821, 7
      %v823 = vsub.s32 %v820, %v822
      %v824 = vrot.slane %v810, %v823
      %v825 = vcombine.high %v817, %v817
      %v826 = vcombine.high %v824, %v824
      %v828 = vunpack.c.l.s4 1983009808
      %v829 = vunpack.c.0.s8 %v828
      %v830 = vlaneseq
      %v831 = vshrl.u32 %v830, 7
      %v832 = vsub.s32 %v829, %v831
      %v833 = vrot.slane %v615, %v832
      %v834 = vcombine.high %v610, %v610
      %v836 = vunpack.c.l.s4 1983009808
      %v837 = vunpack.c.0.s8 %v836
      %v838 = vlaneseq
      %v839 = vshrl.u32 %v838, 7
      %v840 = vsub.s32 %v837, %v839
      %v841 = vrot.slane %v610, %v840
      %v843 = vunpack.c.l.s4 1983009808
      %v844 = vunpack.c.0.s8 %v843
      %v845 = vlaneseq
      %v846 = vshrl.u32 %v845, 7
      %v847 = vsub.s32 %v844, %v846
      %v848 = vrot.slane %v834, %v847
      %v849 = vcombine.high %v841, %v841
      %v850 = vcombine.high %v848, %v848
      %v851 = vcombine.high %v592, %v592
      %v853 = vunpack.c.l.s4 1983009808
      %v854 = vunpack.c.0.s8 %v853
      %v855 = vlaneseq
      %v856 = vshrl.u32 %v855, 7
      %v857 = vsub.s32 %v854, %v856
      %v858 = vrot.slane %v592, %v857
      %v860 = vunpack.c.l.s4 1983009808
      %v861 = vunpack.c.0.s8 %v860
      %v862 = vlaneseq
      %v863 = vshrl.u32 %v862, 7
      %v864 = vsub.s32 %v861, %v863
      %v865 = vrot.slane %v851, %v864
      %v866 = vcombine.high %v858, %v858
      %v867 = vcombine.high %v865, %v865
      %v869 = vunpack.c.l.s4 1983009808
      %v870 = vunpack.c.0.s8 %v869
      %v871 = vlaneseq
      %v872 = vshrl.u32 %v871, 7
      %v873 = vsub.s32 %v870, %v872
      %v874 = vrot.slane %v616, %v873
      %v875 = vcombine.low %v636, %v644
      %v876 = vcombine.low %v643, %v645
      %v878 = vunpack.c.l.s4 1983009808
      %v879 = vunpack.c.0.s8 %v878
      %v880 = vlaneseq
      %v881 = vshrl.u32 %v880, 7
      %v882 = vsub.s32 %v879, %v881
      %v883 = vrot.slane %v875, %v882
      %v885 = vunpack.c.l.s4 1983009808
      %v886 = vunpack.c.0.s8 %v885
      %v887 = vlaneseq
      %v888 = vshrl.u32 %v887, 7
      %v889 = vsub.s32 %v886, %v888
      %v890 = vrot.slane %v876, %v889
      %v891 = vcombine.low %v883, %v890
      %v892 = vcombine.low %v653, %v661
      %v893 = vcombine.low %v660, %v662
      %v895 = vunpack.c.l.s4 1983009808
      %v896 = vunpack.c.0.s8 %v895
      %v897 = vlaneseq
      %v898 = vshrl.u32 %v897, 7
      %v899 = vsub.s32 %v896, %v898
      %v900 = vrot.slane %v892, %v899
      %v902 = vunpack.c.l.s4 1983009808
      %v903 = vunpack.c.0.s8 %v902
      %v904 = vlaneseq
      %v905 = vshrl.u32 %v904, 7
      %v906 = vsub.s32 %v903, %v905
      %v907 = vrot.slane %v893, %v906
      %v908 = vcombine.low %v900, %v907
      %v909 = vcombine.low %v669, %v677
      %v910 = vcombine.low %v685, %v684
      %v912 = vunpack.c.l.s4 1983009808
      %v913 = vunpack.c.0.s8 %v912
      %v914 = vlaneseq
      %v915 = vshrl.u32 %v914, 7
      %v916 = vsub.s32 %v913, %v915
      %v917 = vrot.slane %v909, %v916
      %v919 = vunpack.c.l.s4 1983009808
      %v920 = vunpack.c.0.s8 %v919
      %v921 = vlaneseq
      %v922 = vshrl.u32 %v921, 7
      %v923 = vsub.s32 %v920, %v922
      %v924 = vrot.slane %v910, %v923
      %v925 = vcombine.low %v917, %v924
      %v926 = vcombine.low %v686, %v694
      %v927 = vcombine.low %v702, %v701
      %v929 = vunpack.c.l.s4 1983009808
      %v930 = vunpack.c.0.s8 %v929
      %v931 = vlaneseq
      %v932 = vshrl.u32 %v931, 7
      %v933 = vsub.s32 %v930, %v932
      %v934 = vrot.slane %v926, %v933
      %v936 = vunpack.c.l.s4 1983009808
      %v937 = vunpack.c.0.s8 %v936
      %v938 = vlaneseq
      %v939 = vshrl.u32 %v938, 7
      %v940 = vsub.s32 %v937, %v939
      %v941 = vrot.slane %v927, %v940
      %v942 = vcombine.low %v934, %v941
      %v943 = vcombine.low %v703, %v710
      %v944 = vcombine.low %v718, %v726
      %v946 = vunpack.c.l.s4 1983009808
      %v947 = vunpack.c.0.s8 %v946
      %v948 = vlaneseq
      %v949 = vshrl.u32 %v948, 7
      %v950 = vsub.s32 %v947, %v949
      %v951 = vrot.slane %v943, %v950
      %v953 = vunpack.c.l.s4 1983009808
      %v954 = vunpack.c.0.s8 %v953
      %v955 = vlaneseq
      %v956 = vshrl.u32 %v955, 7
      %v957 = vsub.s32 %v954, %v956
      %v958 = vrot.slane %v944, %v957
      %v959 = vcombine.low %v951, %v958
      %v960 = vcombine.low %v725, %v727
      %v961 = vcombine.low %v735, %v743
      %v963 = vunpack.c.l.s4 1983009808
      %v964 = vunpack.c.0.s8 %v963
      %v965 = vlaneseq
      %v966 = vshrl.u32 %v965, 7
      %v967 = vsub.s32 %v964, %v966
      %v968 = vrot.slane %v960, %v967
      %v970 = vunpack.c.l.s4 1983009808
      %v971 = vunpack.c.0.s8 %v970
      %v972 = vlaneseq
      %v973 = vshrl.u32 %v972, 7
      %v974 = vsub.s32 %v971, %v973
      %v975 = vrot.slane %v961, %v974
      %v976 = vcombine.low %v968, %v975
      %v977 = vcombine.low %v742, %v744
      %v978 = vcombine.low %v751, %v759
      %v980 = vunpack.c.l.s4 1983009808
      %v981 = vunpack.c.0.s8 %v980
      %v982 = vlaneseq
      %v983 = vshrl.u32 %v982, 7
      %v984 = vsub.s32 %v981, %v983
      %v985 = vrot.slane %v977, %v984
      %v987 = vunpack.c.l.s4 1983009808
      %v988 = vunpack.c.0.s8 %v987
      %v989 = vlaneseq
      %v990 = vshrl.u32 %v989, 7
      %v991 = vsub.s32 %v988, %v990
      %v992 = vrot.slane %v978, %v991
      %v993 = vcombine.low %v985, %v992
      %v994 = vcombine.low %v767, %v766
      %v995 = vcombine.low %v768, %v776
      %v997 = vunpack.c.l.s4 1983009808
      %v998 = vunpack.c.0.s8 %v997
      %v999 = vlaneseq
      %v1000 = vshrl.u32 %v999, 7
      %v1001 = vsub.s32 %v998, %v1000
      %v1002 = vrot.slane %v994, %v1001
      %v1004 = vunpack.c.l.s4 1983009808
      %v1005 = vunpack.c.0.s8 %v1004
      %v1006 = vlaneseq
      %v1007 = vshrl.u32 %v1006, 7
      %v1008 = vsub.s32 %v1005, %v1007
      %v1009 = vrot.slane %v995, %v1008
      %v1010 = vcombine.low %v1002, %v1009
      %v1011 = vcombine.low %v784, %v783
      %v1012 = vcombine.low %v785, %v792
      %v1014 = vunpack.c.l.s4 1983009808
      %v1015 = vunpack.c.0.s8 %v1014
      %v1016 = vlaneseq
      %v1017 = vshrl.u32 %v1016, 7
      %v1018 = vsub.s32 %v1015, %v1017
      %v1019 = vrot.slane %v1011, %v1018
      %v1021 = vunpack.c.l.s4 1983009808
      %v1022 = vunpack.c.0.s8 %v1021
      %v1023 = vlaneseq
      %v1024 = vshrl.u32 %v1023, 7
      %v1025 = vsub.s32 %v1022, %v1024
      %v1026 = vrot.slane %v1012, %v1025
      %v1027 = vcombine.low %v1019, %v1026
      %v1028 = vcombine.low %v800, %v808
      %v1029 = vcombine.low %v807, %v809
      %v1031 = vunpack.c.l.s4 1983009808
      %v1032 = vunpack.c.0.s8 %v1031
      %v1033 = vlaneseq
      %v1034 = vshrl.u32 %v1033, 7
      %v1035 = vsub.s32 %v1032, %v1034
      %v1036 = vrot.slane %v1028, %v1035
      %v1038 = vunpack.c.l.s4 1983009808
      %v1039 = vunpack.c.0.s8 %v1038
      %v1040 = vlaneseq
      %v1041 = vshrl.u32 %v1040, 7
      %v1042 = vsub.s32 %v1039, %v1041
      %v1043 = vrot.slane %v1029, %v1042
      %v1044 = vcombine.low %v1036, %v1043
      %v1045 = vcombine.low %v817, %v825
      %v1046 = vcombine.low %v824, %v826
      %v1048 = vunpack.c.l.s4 1983009808
      %v1049 = vunpack.c.0.s8 %v1048
      %v1050 = vlaneseq
      %v1051 = vshrl.u32 %v1050, 7
      %v1052 = vsub.s32 %v1049, %v1051
      %v1053 = vrot.slane %v1045, %v1052
      %v1055 = vunpack.c.l.s4 1983009808
      %v1056 = vunpack.c.0.s8 %v1055
      %v1057 = vlaneseq
      %v1058 = vshrl.u32 %v1057, 7
      %v1059 = vsub.s32 %v1056, %v1058
      %v1060 = vrot.slane %v1046, %v1059
      %v1061 = vcombine.low %v1053, %v1060
      %v1062 = vcombine.low %v833, %v841
      %v1063 = vcombine.low %v849, %v848
      %v1065 = vunpack.c.l.s4 1983009808
      %v1066 = vunpack.c.0.s8 %v1065
      %v1067 = vlaneseq
      %v1068 = vshrl.u32 %v1067, 7
      %v1069 = vsub.s32 %v1066, %v1068
      %v1070 = vrot.slane %v1062, %v1069
      %v1072 = vunpack.c.l.s4 1983009808
      %v1073 = vunpack.c.0.s8 %v1072
      %v1074 = vlaneseq
      %v1075 = vshrl.u32 %v1074, 7
      %v1076 = vsub.s32 %v1073, %v1075
      %v1077 = vrot.slane %v1063, %v1076
      %v1078 = vcombine.low %v1070, %v1077
      %v1079 = vcombine.low %v850, %v858
      %v1080 = vcombine.low %v866, %v865
      %v1082 = vunpack.c.l.s4 1983009808
      %v1083 = vunpack.c.0.s8 %v1082
      %v1084 = vlaneseq
      %v1085 = vshrl.u32 %v1084, 7
      %v1086 = vsub.s32 %v1083, %v1085
      %v1087 = vrot.slane %v1079, %v1086
      %v1089 = vunpack.c.l.s4 1983009808
      %v1090 = vunpack.c.0.s8 %v1089
      %v1091 = vlaneseq
      %v1092 = vshrl.u32 %v1091, 7
      %v1093 = vsub.s32 %v1090, %v1092
      %v1094 = vrot.slane %v1080, %v1093
      %v1095 = vcombine.low %v1087, %v1094
      %v1096 = vcombine.low %v867, %v874
      %v1098 = vunpack.c.l.s4 1983009808
      %v1099 = vunpack.c.0.s8 %v1098
      %v1100 = vlaneseq
      %v1101 = vshrl.u32 %v1100, 7
      %v1102 = vsub.s32 %v1099, %v1101
      %v1103 = vrot.slane %v1096, %v1102
      %1118 = vst [vmem:[#allocation2] sm:$0xff] %v891
      %1119 = vst [vmem:[#allocation2 + $0x8] sm:$0xff] %v908
      %1120 = vst [vmem:[#allocation2 + $0x10] sm:$0xff] %v925
      %1121 = vst [vmem:[#allocation2 + $0x18] sm:$0xff] %v942
      %1122 = vst [vmem:[#allocation2 + $0x20] sm:$0xff] %v959
      %1123 = vst [vmem:[#allocation2 + $0x28] sm:$0xff] %v976
      %1124 = vst [vmem:[#allocation2 + $0x30] sm:$0xff] %v993
      %1125 = vst [vmem:[#allocation2 + $0x38] sm:$0xff] %v1010
      %1126 = vst [vmem:[#allocation2 + $0x40] sm:$0xff] %v1027
      %1127 = vst [vmem:[#allocation2 + $0x48] sm:$0xff] %v1044
      %1128 = vst [vmem:[#allocation2 + $0x50] sm:$0xff] %v1061
      %1129 = vst [vmem:[#allocation2 + $0x58] sm:$0xff] %v1078
      %1130 = vst [vmem:[#allocation2 + $0x60] sm:$0xff] %v1095
      %1131 = vst [vmem:[#allocation2 + $0x68] sm:$0xf] %v1103
      %v1132 = vld [vmem:[#allocation2] ss:$3 sm:$0xff]
      %s1133 = scalar_lea.vmem [#allocation2], 24
      %v1134 = vld [vmem:[%s1133] ss:$3 sm:$0xff]
      %s1135 = scalar_lea.vmem [#allocation2], 48
      %v1136 = vld [vmem:[%s1135] ss:$3 sm:$0xff]
      %s1137 = scalar_lea.vmem [#allocation2], 72
      %v1138 = vld [vmem:[%s1137] ss:$3 sm:$0xff]
      %s1139 = scalar_lea.vmem [#allocation2], 96
      %v1140 = vld [vmem:[%s1139] ss:$3 sm:$0xf]
      %s1141 = scalar_lea.vmem [#allocation2], 1
      %v1142 = vld [vmem:[%s1141] ss:$3 sm:$0xff]
      %s1143 = scalar_lea.vmem [#allocation2], 25
      %v1144 = vld [vmem:[%s1143] ss:$3 sm:$0xff]
      %s1145 = scalar_lea.vmem [#allocation2], 49
      %v1146 = vld [vmem:[%s1145] ss:$3 sm:$0xff]
      %s1147 = scalar_lea.vmem [#allocation2], 73
      %v1148 = vld [vmem:[%s1147] ss:$3 sm:$0xff]
      %s1149 = scalar_lea.vmem [#allocation2], 97
      %v1150 = vld [vmem:[%s1149] ss:$3 sm:$0xf]
      %s1151 = scalar_lea.vmem [#allocation2], 2
      %v1152 = vld [vmem:[%s1151] ss:$3 sm:$0xff]
      %s1153 = scalar_lea.vmem [#allocation2], 26
      %v1154 = vld [vmem:[%s1153] ss:$3 sm:$0xff]
      %s1155 = scalar_lea.vmem [#allocation2], 50
      %v1156 = vld [vmem:[%s1155] ss:$3 sm:$0xff]
      %s1157 = scalar_lea.vmem [#allocation2], 74
      %v1158 = vld [vmem:[%s1157] ss:$3 sm:$0xff]
      %s1159 = scalar_lea.vmem [#allocation2], 98
      %v1160 = vld [vmem:[%s1159] ss:$3 sm:$0xf]
      %v1161 = vmax.f32 %v1132, %v1142
      %v1162 = vmax.f32 %v1134, %v1144
      %v1163 = vmax.f32 %v1136, %v1146
      %v1164 = vmax.f32 %v1138, %v1148
      %v1165 = vmax.f32 %v1140, %v1150
      %v1166 = vmax.f32 %v1161, %v1152
      %v1167 = vmax.f32 %v1162, %v1154
      %v1168 = vmax.f32 %v1163, %v1156
      %v1169 = vmax.f32 %v1164, %v1158
      %v1170 = vmax.f32 %v1165, %v1160
      %1171 = vst [vmem:[%s172] sm:$0xff] %v1166
      %1172 = vst [vmem:[%s172 + $0x8] sm:$0xff] %v1167
      %1173 = vst [vmem:[%s172 + $0x10] sm:$0xff] %v1168
      %1174 = vst [vmem:[%s172 + $0x18] sm:$0xff] %v1169
      %1175 = vst [vmem:[%s172 + $0x20] sm:$0xf] %v1170
      %p1176 = scmp.lt.s32.totalorder %s14, 1
      %s1177 = scalar_select %p1176, %s14, 1
      %s1178 = smul.addr %s1177, 5
      %s1179 = smul.addr %s1178, 8
      %s1180 = scalar_lea.vmem %s3, %s1179
      // Predicated region
      $region33: #{tpu_custom_call.1} parent=31 // pred_check
        %p1181 = pneg %p100
      $region34: #{tpu_custom_call.1} parent=31 // pred_check_branch
        %1183 = sbr.rel (%p1181) target = $region36
      $region35: #{tpu_custom_call.1} parent=31 // pred_region
        _
      $region36: #{tpu_custom_call.1} parent=31 // pred_fallthru
        _
    $region32: #{tpu_custom_call.1} parent=5 // pred_fallthru
      _
    %p1184 = scmp.le.s32.totalorder 2, %s9
    // Predicated region
    $region37: #{tpu_custom_call.1} parent=5 // pred_check
      %p1185 = pneg %p1184
    $region38: #{tpu_custom_call.1} parent=5 // pred_check_branch
      %1187 = sbr.rel (%p1185) target = $region40
    $region39: #{tpu_custom_call.1} parent=5 // pred_region
      %s1188 = ssub.s32 %s9, 2
      // Predicated region
      $region41: #{tpu_custom_call.1} parent=39 // pred_check
        %p1189 = pneg %p106
      $region42: #{tpu_custom_call.1} parent=39 // pred_check_branch
        %1191 = sbr.rel (%p1189) target = $region44
      $region43: #{tpu_custom_call.1} parent=39 // pred_region
        %p1192 = scmp.lt.s32.totalorder %s15, 1
        %s1193 = scalar_select %p1192, %s15, 1
        %s1194 = smul.addr %s1193, 5
        %s1195 = smul.addr %s1194, 8
        %s1196 = scalar_lea.vmem %s3, %s1195
      $region44: #{tpu_custom_call.1} parent=39 // pred_fallthru
        _
    $region40: #{tpu_custom_call.1} parent=5 // pred_fallthru
      _
  $region6: #{tpu_custom_call.1} parent=0 // loop_footer
    %s13 = sadd.s32 1, %s9
  $region7: #{tpu_custom_call.1} parent=0 // loop_footer_branch
    %8 = sbr.rel target = $region3
  $region8: #{tpu_custom_call.1} parent=0 // loop_exit
    _

</llo_original>
